<compile_context>
chip_gen: v6e
topology: v6e:2x2x1
jax: 0.10.0
libtpu: 0.0.40
codegen_flags: <defaults>
</compile_context>

<pallas_src>
import jax
import jax.numpy as jnp
from jax.experimental import pallas as pl
from jax.experimental.pallas import tpu as pltpu

LANE = 128


def predictor_kernel(y_ref, xw_ref, w1y_ref, b1y_ref, wy_ref, w2_ref, b2_ref,
                     out_ref):
    # Blocks (one grid step = one batch row b, one tile of TILE_S samples):
    #   y_ref   : (1, 1, TILE_S)  y samples for batch b (lane-dense), compute dtype
    #   xw_ref  : (B, H, 1)       resident x_feature@Wx^T + b1_xy, f32
    #   w1y_ref : (H, 1)          fc1_y weight (input_dim == 1), compute dtype
    #   b1y_ref : (H, 1)          fc1_y bias, compute dtype
    #   wy_ref  : (H, H)          y-half of fc1_xy weight, compute dtype
    #   w2_ref  : (1, H)          fc2_xy weight, compute dtype
    #   b2_ref  : (1, 1)          fc2_xy bias, f32
    #   out_ref : (1, 1, TILE_S)  score row (lane-dense), f32
    b = pl.program_id(0)
    y_row = y_ref[0]                 # (1, TILE_S)
    xw_col = xw_ref[b]               # (H, 1) f32, resident slab -> no per-batch DMA

    # fc1_y: Linear(1, H).  K == 1 -> outer-product broadcast in column layout.
    y_feat = jnp.tanh(w1y_ref[...] * y_row + b1y_ref[...])          # (H, TILE_S)

    # fc1_xy on cat([x, y_feat]): Wy @ y_feat (MXU, f32 accumulate) + per-batch
    # precomputed x-part-plus-bias column.
    h = jnp.tanh(
        jnp.dot(wy_ref[...], y_feat, preferred_element_type=jnp.float32)
        + xw_col)                                                    # (H, TILE_S) f32
    h = h.astype(wy_ref.dtype)

    # fc2_xy: Linear(H, 1) -> lane-dense (1, TILE_S) score row (unmasked store).
    s = jnp.tanh(
        jnp.dot(w2_ref[...], h, preferred_element_type=jnp.float32)
        + b2_ref[...])                                               # (1, TILE_S) f32

    out_ref[0, :, :] = s.astype(out_ref.dtype)


def init_params(key, input_dim=1, hidden_dim=32):
    ks = jax.random.split(key, 6)
    H = hidden_dim
    scale = 0.5
    return {
        "fc1_y_w":  scale * jax.random.normal(ks[0], (H, input_dim), jnp.float32),
        "fc1_y_b":  scale * jax.random.normal(ks[1], (H,),           jnp.float32),
        "fc1_xy_w": scale * jax.random.normal(ks[2], (H, 2 * H),     jnp.float32),
        "fc1_xy_b": scale * jax.random.normal(ks[3], (H,),           jnp.float32),
        "fc2_xy_w": scale * jax.random.normal(ks[4], (1, H),         jnp.float32),
        "fc2_xy_b": scale * jax.random.normal(ks[5], (1,),           jnp.float32),
    }


def predictor_net_forward(x_feature, y, params, *, tile_s=None,
                          compute_dtype=jnp.float32):
    """Glue reshapes / per-batch x contribution in XLA; hot path in Pallas.

    compute_dtype=jnp.bfloat16 halves EUP/MXU pressure on v6e/v7x (tanh and the
    MXU dots run on bf16 operands with f32 accumulation); keep f32 on v5e or
    when tight (1e-4) agreement with the f32 reference is required.
    """
    if y.ndim == 1:
        y = y.reshape(-1, 1)
    B, S = y.shape
    H = params["fc1_y_w"].shape[0]

    x2 = x_feature.reshape(B, -1).astype(jnp.float32)
    F_dim = x2.shape[-1]

    # Split fc1_xy weight into the x-part and the y_feature-part.
    w1xy = params["fc1_xy_w"].astype(jnp.float32)        # (H, F + H)
    assert w1xy.shape[1] == F_dim + H, (
        "fc1_xy expects cat([x_feature, y_feature]): flattened x dim + hidden dim")
    wx = w1xy[:, :F_dim]                                 # (H, F)
    wy_mat = w1xy[:, F_dim:]                             # (H, H)

    # Sample-tile size: lane-dense multiple of 128, as large as practical so the
    # ~0.35 us per-grid-step pipeline overhead is amortized.  VMEM cost per tile
    # is ~16 B * tile_s double-buffered (y in + score out) + ~8 KiB of resident
    # weights, so the 8192 cap stays well under every chip's VMEM budget.
    S_ceil = pl.cdiv(S, LANE) * LANE
    if tile_s is None:
        tile_s = min(8192, S_ceil)
        # v7x has 2 TensorCores: keep >= 2 grid steps when B == 1 so both get work.
        if B == 1 and S_ceil > LANE and S_ceil // tile_s < 2:
            tile_s = max(LANE, pl.cdiv(S_ceil // 2, LANE) * LANE)
    assert tile_s % LANE == 0
    S_pad = pl.cdiv(S, tile_s) * tile_s

    # Per-batch x contribution + fc1_xy bias: one tiny (B,F)@(F,H) matmul in XLA
    # instead of an S-fold expanded matmul inside the kernel.  Kept f32 and made
    # a VMEM-resident (B, H, 1) slab (constant index_map, dynamic row read).
    xw = x2 @ wx.T + params["fc1_xy_b"].astype(jnp.float32)[None, :]   # (B, H)
    xw = xw.reshape(B, H, 1)

    cd = compute_dtype
    y_in = y.astype(cd)
    if S_pad != S:
        # Pad only when needed (extra XLA read+write of y otherwise avoided).
        y_in = jnp.pad(y_in, ((0, 0), (0, S_pad - S)))
    y_in = y_in.reshape(B, 1, S_pad)

    w1y = params["fc1_y_w"].astype(cd).reshape(H, 1)     # input_dim == 1
    b1y = params["fc1_y_b"].astype(cd).reshape(H, 1)
    wy_mat = wy_mat.astype(cd)
    w2 = params["fc2_xy_w"].astype(cd).reshape(1, H)
    b2 = params["fc2_xy_b"].astype(jnp.float32).reshape(1, 1)

    grid = (B, S_pad // tile_s)

    out = pl.pallas_call(
        predictor_kernel,
        out_shape=jax.ShapeDtypeStruct((B, 1, S_pad), jnp.float32),
        grid_spec=pltpu.PrefetchScalarGridSpec(
            num_scalar_prefetch=0,
            grid=grid,
            in_specs=[
                pl.BlockSpec((1, 1, tile_s), lambda b, j: (b, 0, j)),  # y tile
                pl.BlockSpec((B, H, 1),      lambda b, j: (0, 0, 0)),  # xw (resident)
                pl.BlockSpec((H, 1),         lambda b, j: (0, 0)),     # w1y (resident)
                pl.BlockSpec((H, 1),         lambda b, j: (0, 0)),     # b1y
                pl.BlockSpec((H, H),         lambda b, j: (0, 0)),     # wy
                pl.BlockSpec((1, H),         lambda b, j: (0, 0)),     # w2
                pl.BlockSpec((1, 1),         lambda b, j: (0, 0)),     # b2
            ],
            out_specs=pl.BlockSpec((1, 1, tile_s), lambda b, j: (b, 0, j)),
        ),
        compiler_params=pltpu.CompilerParams(
            # Both grid axes are independent -> shardable across v7x's 2 TCs.
            dimension_semantics=("parallel", "parallel"),
        ),
    )(y_in, xw, w1y, b1y, wy_mat, w2, b2)

    out = out.reshape(B, S_pad)          # free squeeze, no 3-D slice copy
    if S_pad != S:
        out = out[:, :S]
    return out


def predictor_net_reference(x_feature, y, params):
    """Pure-JAX reference mirroring the PyTorch forward exactly."""
    if y.ndim == 1:
        y = y.reshape(-1, 1)
    B, S = y.shape
    xf = x_feature.reshape(B, -1)
    x = jnp.broadcast_to(xf[:, None, :], (B, S, xf.shape[-1])).reshape(B * S, -1)
    yf = jnp.tanh(y.reshape(B * S, 1) @ params["fc1_y_w"].T + params["fc1_y_b"])
    xy = jnp.concatenate([x, yf], axis=1)
    h = jnp.tanh(xy @ params["fc1_xy_w"].T + params["fc1_xy_b"])
    s = jnp.tanh(h @ params["fc2_xy_w"].T + params["fc2_xy_b"])
    return s.reshape(B, S)


if __name__ == "__main__":
    B, S, H = 2, 8, 32   # batch, num_samples, hidden_dim (x_feature dim == H)

    key = jax.random.PRNGKey(0)
    k_params, k_x, k_y = jax.random.split(key, 3)
    params = init_params(k_params, input_dim=1, hidden_dim=H)

    x_feature = jax.random.normal(k_x, (B, H), jnp.float32)
    y = jax.random.normal(k_y, (B, S), jnp.float32)

    score = predictor_net_forward(x_feature, y, params)
    jax.block_until_ready(score)

    ref = predictor_net_reference(x_feature, y, params)
    assert score.shape == (B, S)
    assert jnp.allclose(score, ref, atol=1e-4, rtol=1e-4), "mismatch vs reference"

    # Check 2: non-multiple-of-tile S, multiple sample tiles per batch
    # (exercises padding, the trailing slice, and the 2-D pipelined grid).
    B2, S2 = 3, 260
    k2x, k2y = jax.random.split(jax.random.PRNGKey(1))
    x2 = jax.random.normal(k2x, (B2, H), jnp.float32)
    y2 = jax.random.normal(k2y, (B2, S2), jnp.float32)
    s2 = predictor_net_forward(x2, y2, params, tile_s=128)
    jax.block_until_ready(s2)
    r2 = predictor_net_reference(x2, y2, params)
    assert s2.shape == (B2, S2)
    assert jnp.allclose(s2, r2, atol=1e-4, rtol=1e-4), "mismatch vs reference (tiled)"

    # Check 3: S already a multiple of 128 with the large default tile
    # (exercises the no-pad / no-slice fast path).
    B3, S3 = 2, 1024
    k3x, k3y = jax.random.split(jax.random.PRNGKey(2))
    x3 = jax.random.normal(k3x, (B3, H), jnp.float32)
    y3 = jax.random.normal(k3y, (B3, S3), jnp.float32)
    s3 = predictor_net_forward(x3, y3, params)
    jax.block_until_ready(s3)
    r3 = predictor_net_reference(x3, y3, params)
    assert s3.shape == (B3, S3)
    assert jnp.allclose(s3, r3, atol=1e-4, rtol=1e-4), "mismatch vs reference (big tile)"

    # Check 4: optional bf16 compute path (EUP/MXU relief on v6e/v7x); numerics
    # are intentionally looser, so only smoke-check against the f32 reference.
    s4 = predictor_net_forward(x3, y3, params, compute_dtype=jnp.bfloat16)
    jax.block_until_ready(s4)
    assert s4.shape == (B3, S3)
    assert bool(jnp.all(jnp.isfinite(s4)))
    assert float(jnp.max(jnp.abs(s4 - r3))) < 0.1, "bf16 path drifted too far"

    print("KERNEL_OK")
</pallas_src>

<mosaic_0001>
module attributes {stable_mosaic.version = 11 : i64} {
  func.func @predictor_kernel(%arg0: i32, %arg1: i32, %arg2: memref<1x1x128xf32, #tpu.memory_space<vmem>>, %arg3: memref<2x32x1xf32, #tpu.memory_space<vmem>>, %arg4: memref<32x1xf32, #tpu.memory_space<vmem>>, %arg5: memref<32x1xf32, #tpu.memory_space<vmem>>, %arg6: memref<32x32xf32, #tpu.memory_space<vmem>>, %arg7: memref<1x32xf32, #tpu.memory_space<vmem>>, %arg8: memref<1x1xf32, #tpu.memory_space<vmem>>, %arg9: memref<1x1x128xf32, #tpu.memory_space<vmem>>) attributes {dimension_semantics = [#tpu.dimension_semantics<parallel>, #tpu.dimension_semantics<parallel>], iteration_bounds = array<i64: 2, 1>, scalar_prefetch = 0 : i64, scratch_operands = 0 : i64, tpu.core_type = #tpu.core_type<tc>, window_params = [{transform_indices = @transform_0, window_bounds = array<i64: 1, 1, 128>}, {pipeline_mode = #tpu.pipeline_mode<synchronous>, transform_indices = @transform_1, window_bounds = array<i64: 2, 32, 1>}, {pipeline_mode = #tpu.pipeline_mode<synchronous>, transform_indices = @transform_2, window_bounds = array<i64: 32, 1>}, {pipeline_mode = #tpu.pipeline_mode<synchronous>, transform_indices = @transform_3, window_bounds = array<i64: 32, 1>}, {pipeline_mode = #tpu.pipeline_mode<synchronous>, transform_indices = @transform_4, window_bounds = array<i64: 32, 32>}, {pipeline_mode = #tpu.pipeline_mode<synchronous>, transform_indices = @transform_5, window_bounds = array<i64: 1, 32>}, {pipeline_mode = #tpu.pipeline_mode<synchronous>, transform_indices = @transform_6, window_bounds = array<i64: 1, 1>}, {transform_indices = @transform_7, window_bounds = array<i64: 1, 1, 128>}]} {
    %c0 = arith.constant 0 : index
    %c0_0 = arith.constant 0 : index
    %c0_1 = arith.constant 0 : index
    %0 = vector.load %arg2[%c0, %c0_0, %c0_1] : memref<1x1x128xf32, #tpu.memory_space<vmem>>, vector<1x1x128xf32>
    %1 = vector.shape_cast %0 : vector<1x1x128xf32> to vector<1x128xf32>
    %2 = arith.index_cast %arg0 : i32 to index
    %c0_2 = arith.constant 0 : index
    %c0_3 = arith.constant 0 : index
    %3 = vector.load %arg3[%2, %c0_2, %c0_3] : memref<2x32x1xf32, #tpu.memory_space<vmem>>, vector<1x32x1xf32>
    %4 = vector.shape_cast %3 : vector<1x32x1xf32> to vector<32x1xf32>
    %c0_4 = arith.constant 0 : index
    %c0_5 = arith.constant 0 : index
    %5 = vector.load %arg4[%c0_4, %c0_5] : memref<32x1xf32, #tpu.memory_space<vmem>>, vector<32x1xf32>
    %6 = vector.broadcast %5 : vector<32x1xf32> to vector<32x128xf32>
    %7 = vector.broadcast %1 : vector<1x128xf32> to vector<32x128xf32>
    %8 = arith.mulf %6, %7 : vector<32x128xf32>
    %c0_6 = arith.constant 0 : index
    %c0_7 = arith.constant 0 : index
    %9 = vector.load %arg5[%c0_6, %c0_7] : memref<32x1xf32, #tpu.memory_space<vmem>>, vector<32x1xf32>
    %10 = vector.broadcast %9 : vector<32x1xf32> to vector<32x128xf32>
    %11 = arith.addf %8, %10 : vector<32x128xf32>
    %12 = math.tanh %11 : vector<32x128xf32>
    %c0_8 = arith.constant 0 : index
    %c0_9 = arith.constant 0 : index
    %13 = vector.load %arg6[%c0_8, %c0_9] : memref<32x32xf32, #tpu.memory_space<vmem>>, vector<32x32xf32>
    %cst = arith.constant dense<0.000000e+00> : vector<32x128xf32>
    %14 = tpu.matmul %13, %12, %cst {dimension_numbers = #tpu.dot_dimension_numbers<[1], [0], [0], [1], [0, 0, 1, 1], [], []>} : vector<32x32xf32>, vector<32x128xf32>, vector<32x128xf32> -> vector<32x128xf32>
    %15 = vector.broadcast %4 : vector<32x1xf32> to vector<32x128xf32>
    %16 = arith.addf %14, %15 : vector<32x128xf32>
    %17 = math.tanh %16 : vector<32x128xf32>
    %c0_10 = arith.constant 0 : index
    %c0_11 = arith.constant 0 : index
    %18 = vector.load %arg7[%c0_10, %c0_11] : memref<1x32xf32, #tpu.memory_space<vmem>>, vector<1x32xf32>
    %cst_12 = arith.constant dense<0.000000e+00> : vector<1x128xf32>
    %19 = tpu.matmul %18, %17, %cst_12 {dimension_numbers = #tpu.dot_dimension_numbers<[1], [0], [0], [1], [0, 0, 1, 1], [], []>} : vector<1x32xf32>, vector<32x128xf32>, vector<1x128xf32> -> vector<1x128xf32>
    %c0_13 = arith.constant 0 : index
    %c0_14 = arith.constant 0 : index
    %20 = vector.load %arg8[%c0_13, %c0_14] : memref<1x1xf32, #tpu.memory_space<vmem>>, vector<1x1xf32>
    %21 = vector.broadcast %20 : vector<1x1xf32> to vector<1x128xf32>
    %22 = arith.addf %19, %21 : vector<1x128xf32>
    %23 = math.tanh %22 : vector<1x128xf32>
    %c0_15 = arith.constant 0 : index
    %c0_16 = arith.constant 0 : index
    %c0_17 = arith.constant 0 : index
    %24 = vector.load %arg9[%c0_15, %c0_16, %c0_17] : memref<1x1x128xf32, #tpu.memory_space<vmem>>, vector<1x1x128xf32>
    %25 = vector.shape_cast %24 : vector<1x1x128xf32> to vector<1x128xf32>
    %26 = vector.shape_cast %23 : vector<1x128xf32> to vector<1x1x128xf32>
    tpu.vector_store %arg9[%c0_15, %c0_16, %c0_17], %26 {strides = array<i32>} : memref<1x1x128xf32, #tpu.memory_space<vmem>>, vector<1x1x128xf32>,
    return
  }
  func.func @transform_0(%arg0: i32, %arg1: i32) -> (i32, i32, i32) {
    %c0_i32 = arith.constant 0 : i32
    %c0_i32_0 = arith.constant 0 : i32
    return %arg0, %c0_i32, %arg1 : i32, i32, i32
  }
  func.func @transform_1(%arg0: i32, %arg1: i32) -> (i32, i32, i32) {
    %c0_i32 = arith.constant 0 : i32
    %c0_i32_0 = arith.constant 0 : i32
    %c0_i32_1 = arith.constant 0 : i32
    %c0_i32_2 = arith.constant 0 : i32
    return %c0_i32, %c0_i32_0, %c0_i32_1 : i32, i32, i32
  }
  func.func @transform_2(%arg0: i32, %arg1: i32) -> (i32, i32) {
    %c0_i32 = arith.constant 0 : i32
    %c0_i32_0 = arith.constant 0 : i32
    %c0_i32_1 = arith.constant 0 : i32
    return %c0_i32, %c0_i32_0 : i32, i32
  }
  func.func @transform_3(%arg0: i32, %arg1: i32) -> (i32, i32) {
    %c0_i32 = arith.constant 0 : i32
    %c0_i32_0 = arith.constant 0 : i32
    %c0_i32_1 = arith.constant 0 : i32
    return %c0_i32, %c0_i32_0 : i32, i32
  }
  func.func @transform_4(%arg0: i32, %arg1: i32) -> (i32, i32) {
    %c0_i32 = arith.constant 0 : i32
    %c0_i32_0 = arith.constant 0 : i32
    %c0_i32_1 = arith.constant 0 : i32
    return %c0_i32, %c0_i32_0 : i32, i32
  }
  func.func @transform_5(%arg0: i32, %arg1: i32) -> (i32, i32) {
    %c0_i32 = arith.constant 0 : i32
    %c0_i32_0 = arith.constant 0 : i32
    %c0_i32_1 = arith.constant 0 : i32
    return %c0_i32, %c0_i32_0 : i32, i32
  }
  func.func @transform_6(%arg0: i32, %arg1: i32) -> (i32, i32) {
    %c0_i32 = arith.constant 0 : i32
    %c0_i32_0 = arith.constant 0 : i32
    %c0_i32_1 = arith.constant 0 : i32
    return %c0_i32, %c0_i32_0 : i32, i32
  }
  func.func @transform_7(%arg0: i32, %arg1: i32) -> (i32, i32, i32) {
    %c0_i32 = arith.constant 0 : i32
    %c0_i32_0 = arith.constant 0 : i32
    return %arg0, %c0_i32, %arg1 : i32, i32, i32
  }
}

</mosaic_0001>

<llo_original>
// kernel: tpu_custom_call.1
$region0: #{tpu_custom_call.1}
  #allocation0 [shape = 'u32[]', space=smem, size = 0x4, offset = 0x4, fixed_abs, tag = 'smem constant byte address 0x4 - core index']
  #allocation1 [shape = 'u32[144,128]{1,0:T(1,128)}', space=vmem, size = 0x12000, scoped, tag = 'internal scratch']
  #allocation2 [shape = 'f32[1,1]{1,0:T(1,128)S(1)}', space=vmem, size = 0x200, scoped, tag = 'scoped memory for tpu_custom_call.1']
  %s0 = inlined_call_operand.vmem [shape: f32[2,1,128], index: 0, kind: input, shape index: {}]
  %s1 = inlined_call_operand.vmem [shape: f32[2,32,1], index: 1, kind: input, shape index: {}]
  %s2 = inlined_call_operand.vmem [shape: f32[32,1], index: 2, kind: input, shape index: {}]
  %s3 = inlined_call_operand.vmem [shape: f32[32,1], index: 3, kind: input, shape index: {}]
  %s4 = inlined_call_operand.vmem [shape: f32[32,32], index: 4, kind: input, shape index: {}]
  %s5 = inlined_call_operand.vmem [shape: f32[1,32], index: 5, kind: input, shape index: {}]
  %s6 = inlined_call_operand.<no memory space> [shape: f32[1,1], index: 6, kind: input, shape index: {}]
  %s7 = inlined_call_operand.hbm [shape: f32[2,1,128], index: 7, kind: output, shape index: {}]
  %s8 = sld [smem:[#allocation0]]
  $region61: #{tpu_custom_call.1} parent=0
    _
  %s10 = ssub.s32 1, %s8
  %s11 = scalar_select 0, %s10, %s8
  %v12 = vstv %s6
  %13 = vst [vmem:[#allocation2] sm:$0x1] %v12
  $region1: #{tpu_custom_call.1} parent=0
    #allocation3 [shape = 'u8[1024]{0}', space=vmem, size = 0x400, scoped, tag = 'output window, operand 0']
    #allocation4 [shape = 's32[2]{0}', space=sflag, size = 0x8, scoped, tag = 'scoped memory for tpu_custom_call.1']
    %14 = vsyncpa [#allocation4], 0
    %s15 = scalar_lea.sflag [#allocation4], 1
    %16 = vsyncpa %s15, 0
    loop: start=0, step=1, limit=4
    $region2: #{tpu_custom_call.1} parent=1 // loop_pre_header
      _
    $region3: #{tpu_custom_call.1} parent=1 // loop_header
      %s18 = sphi 0, %s22
      %p19 = scmp.ge.s32.totalorder %s18, 4
      %s25 = sphi 0, %s37
      %s26 = sphi 0, %s33
      %s27 = sphi 0, %s25
      %s28 = sphi 0, %s26
      %s29 = sphi 0, %s27
      %s30 = sphi 0, %s28
      %s42 = sphi 0, %s44
      %s45 = sphi 0, %s42
      %s46 = sphi 0, %s45
      %s62 = sphi 0, %s46
      %s66 = sphi 0, %s66
      %s68 = sphi 0, %s66
      %s69 = sphi 0, %s68
      %s83 = sphi 0, %s69
      %s87 = sphi 0, %s87
      %s89 = sphi 0, %s87
      %s90 = sphi 0, %s89
      %s104 = sphi 0, %s90
      %s108 = sphi 0, %s108
      %s110 = sphi 0, %s108
      %s111 = sphi 0, %s110
      %s125 = sphi 0, %s111
      %s129 = sphi 0, %s129
      %s131 = sphi 0, %s129
      %s132 = sphi 0, %s131
      %s146 = sphi 0, %s132
      %s150 = sphi 0, %s150
      %s152 = sphi 0, %s150
      %s153 = sphi 0, %s152
      %s167 = sphi 0, %s153
      %s171 = sphi 0, %s171
      %s173 = sphi 0, %s171
      %s174 = sphi 0, %s173
      %s188 = sphi 0, %s174
      %s196 = sphi 0, %s198
      %s199 = sphi 0, %s196
      %s200 = sphi 0, %s199
      %s216 = sphi 0, %s200
    $region4: #{tpu_custom_call.1} parent=1 // loop_header_branch
      %21 = sbr.rel (%p19) target = $region8
    $region5: #{tpu_custom_call.1} parent=1 // loop_body
      %s23 = ssub.s32 %s18, 1
      %s24 = ssub.s32 %s18, 2
      %s31 = sadd.s32 1, %s26
      %p32 = scmp.ge.s32.totalorder %s31, 1
      %s33 = scalar_select %p32, 0, %s31
      %s34 = sadd.s32 1, %s25
      %s35 = scalar_select %p32, %s34, %s25
      %p36 = scmp.ge.s32.totalorder %s35, 2
      %s37 = scalar_select %p36, 0, %s35
      %s38 = ssub.s32 %s25, %s37
      %s39 = ssub.s32 %s26, %s33
      %s40 = sor.u32 %s38, %s39
      %p41 = scmp.eq.s32.totalorder %s40, 0
      %s43 = sadd.s32 %s42, 1
      %s44 = scalar_select %p41, %s42, %s43
      %p47 = pneg %p41
      %p48 = scmp.eq.s32.totalorder %s18, 1
      %p49 = por %p47, %p48
      %p50 = scmp.ne.s32.totalorder %s42, %s45
      %p51 = scmp.eq.s32.totalorder %s18, 0
      %p52 = por %p50, %p51
      %p53 = scmp.ne.s32.totalorder %s42, %s45
      %p54 = scmp.eq.s32.totalorder %s23, 1
      %p55 = por %p53, %p54
      %p56 = scmp.ne.s32.totalorder %s45, %s46
      %p57 = scmp.eq.s32.totalorder %s23, 0
      %p58 = por %p56, %p57
      %p59 = scmp.ne.s32.totalorder %s45, %s46
      %p60 = scmp.eq.s32.totalorder %s24, 1
      %p61 = por %p59, %p60
      %p63 = scmp.ne.s32.totalorder %s46, %s62
      %p64 = scmp.eq.s32.totalorder %s24, 0
      %p65 = por %p63, %p64
      %s67 = sadd.s32 %s66, 1
      %p70 = scmp.eq.s32.totalorder %s18, 1
      %p71 = scmp.ne.s32.totalorder %s66, %s68
      %p72 = scmp.eq.s32.totalorder %s18, 0
      %p73 = por %p71, %p72
      %p74 = scmp.ne.s32.totalorder %s66, %s68
      %p75 = scmp.eq.s32.totalorder %s23, 1
      %p76 = por %p74, %p75
      %p77 = scmp.ne.s32.totalorder %s68, %s69
      %p78 = scmp.eq.s32.totalorder %s23, 0
      %p79 = por %p77, %p78
      %p80 = scmp.ne.s32.totalorder %s68, %s69
      %p81 = scmp.eq.s32.totalorder %s24, 1
      %p82 = por %p80, %p81
      %p84 = scmp.ne.s32.totalorder %s69, %s83
      %p85 = scmp.eq.s32.totalorder %s24, 0
      %p86 = por %p84, %p85
      %s88 = sadd.s32 %s87, 1
      %p91 = scmp.eq.s32.totalorder %s18, 1
      %p92 = scmp.ne.s32.totalorder %s87, %s89
      %p93 = scmp.eq.s32.totalorder %s18, 0
      %p94 = por %p92, %p93
      %p95 = scmp.ne.s32.totalorder %s87, %s89
      %p96 = scmp.eq.s32.totalorder %s23, 1
      %p97 = por %p95, %p96
      %p98 = scmp.ne.s32.totalorder %s89, %s90
      %p99 = scmp.eq.s32.totalorder %s23, 0
      %p100 = por %p98, %p99
      %p101 = scmp.ne.s32.totalorder %s89, %s90
      %p102 = scmp.eq.s32.totalorder %s24, 1
      %p103 = por %p101, %p102
      %p105 = scmp.ne.s32.totalorder %s90, %s104
      %p106 = scmp.eq.s32.totalorder %s24, 0
      %p107 = por %p105, %p106
      %s109 = sadd.s32 %s108, 1
      %p112 = scmp.eq.s32.totalorder %s18, 1
      %p113 = scmp.ne.s32.totalorder %s108, %s110
      %p114 = scmp.eq.s32.totalorder %s18, 0
      %p115 = por %p113, %p114
      %p116 = scmp.ne.s32.totalorder %s108, %s110
      %p117 = scmp.eq.s32.totalorder %s23, 1
      %p118 = por %p116, %p117
      %p119 = scmp.ne.s32.totalorder %s110, %s111
      %p120 = scmp.eq.s32.totalorder %s23, 0
      %p121 = por %p119, %p120
      %p122 = scmp.ne.s32.totalorder %s110, %s111
      %p123 = scmp.eq.s32.totalorder %s24, 1
      %p124 = por %p122, %p123
      %p126 = scmp.ne.s32.totalorder %s111, %s125
      %p127 = scmp.eq.s32.totalorder %s24, 0
      %p128 = por %p126, %p127
      %s130 = sadd.s32 %s129, 1
      %p133 = scmp.eq.s32.totalorder %s18, 1
      %p134 = scmp.ne.s32.totalorder %s129, %s131
      %p135 = scmp.eq.s32.totalorder %s18, 0
      %p136 = por %p134, %p135
      %p137 = scmp.ne.s32.totalorder %s129, %s131
      %p138 = scmp.eq.s32.totalorder %s23, 1
      %p139 = por %p137, %p138
      %p140 = scmp.ne.s32.totalorder %s131, %s132
      %p141 = scmp.eq.s32.totalorder %s23, 0
      %p142 = por %p140, %p141
      %p143 = scmp.ne.s32.totalorder %s131, %s132
      %p144 = scmp.eq.s32.totalorder %s24, 1
      %p145 = por %p143, %p144
      %p147 = scmp.ne.s32.totalorder %s132, %s146
      %p148 = scmp.eq.s32.totalorder %s24, 0
      %p149 = por %p147, %p148
      %s151 = sadd.s32 %s150, 1
      %p154 = scmp.eq.s32.totalorder %s18, 1
      %p155 = scmp.ne.s32.totalorder %s150, %s152
      %p156 = scmp.eq.s32.totalorder %s18, 0
      %p157 = por %p155, %p156
      %p158 = scmp.ne.s32.totalorder %s150, %s152
      %p159 = scmp.eq.s32.totalorder %s23, 1
      %p160 = por %p158, %p159
      %p161 = scmp.ne.s32.totalorder %s152, %s153
      %p162 = scmp.eq.s32.totalorder %s23, 0
      %p163 = por %p161, %p162
      %p164 = scmp.ne.s32.totalorder %s152, %s153
      %p165 = scmp.eq.s32.totalorder %s24, 1
      %p166 = por %p164, %p165
      %p168 = scmp.ne.s32.totalorder %s153, %s167
      %p169 = scmp.eq.s32.totalorder %s24, 0
      %p170 = por %p168, %p169
      %s172 = sadd.s32 %s171, 1
      %p175 = scmp.eq.s32.totalorder %s18, 1
      %p176 = scmp.ne.s32.totalorder %s171, %s173
      %p177 = scmp.eq.s32.totalorder %s18, 0
      %p178 = por %p176, %p177
      %p179 = scmp.ne.s32.totalorder %s171, %s173
      %p180 = scmp.eq.s32.totalorder %s23, 1
      %p181 = por %p179, %p180
      %p182 = scmp.ne.s32.totalorder %s173, %s174
      %p183 = scmp.eq.s32.totalorder %s23, 0
      %p184 = por %p182, %p183
      %p185 = scmp.ne.s32.totalorder %s173, %s174
      %p186 = scmp.eq.s32.totalorder %s24, 1
      %p187 = por %p185, %p186
      %p189 = scmp.ne.s32.totalorder %s174, %s188
      %p190 = scmp.eq.s32.totalorder %s24, 0
      %p191 = por %p189, %p190
      %s192 = ssub.s32 %s25, %s37
      %s193 = ssub.s32 %s26, %s33
      %s194 = sor.u32 %s192, %s193
      %p195 = scmp.eq.s32.totalorder %s194, 0
      %s197 = sadd.s32 %s196, 1
      %s198 = scalar_select %p195, %s196, %s197
      %p201 = pneg %p195
      %p202 = scmp.eq.s32.totalorder %s18, 1
      %p203 = por %p201, %p202
      %p204 = scmp.ne.s32.totalorder %s196, %s199
      %p205 = scmp.eq.s32.totalorder %s18, 0
      %p206 = por %p204, %p205
      %p207 = scmp.ne.s32.totalorder %s196, %s199
      %p208 = scmp.eq.s32.totalorder %s23, 1
      %p209 = por %p207, %p208
      %p210 = scmp.ne.s32.totalorder %s199, %s200
      %p211 = scmp.eq.s32.totalorder %s23, 0
      %p212 = por %p210, %p211
      %p213 = scmp.ne.s32.totalorder %s199, %s200
      %p214 = scmp.eq.s32.totalorder %s24, 1
      %p215 = por %p213, %p214
      %p217 = scmp.ne.s32.totalorder %s200, %s216
      %p218 = scmp.eq.s32.totalorder %s24, 0
      %p219 = por %p217, %p218
      %p220 = scmp.le.s32.totalorder 1, %s18
      %p221 = scmp.lt.s32.totalorder %s18, 3
      %p222 = pnand %p220, %p221
      %p223 = pneg %p222
      // Predicated region
      $region9: #{tpu_custom_call.1} parent=5 // pred_check
        _
      $region10: #{tpu_custom_call.1} parent=5 // pred_check_branch
        %225 = sbr.rel (%p222) target = $region12
      $region11: #{tpu_custom_call.1} parent=5 // pred_region
        %s226 = ssub.s32 %s18, 1
        // Predicated region
        $region13: #{tpu_custom_call.1} parent=11 // pred_check
          %p227 = pneg %p79
        $region14: #{tpu_custom_call.1} parent=11 // pred_check_branch
          %229 = sbr.rel (%p227) target = $region16
        $region15: #{tpu_custom_call.1} parent=11 // pred_region
          _
        $region16: #{tpu_custom_call.1} parent=11 // pred_fallthru
          _
        // Predicated region
        $region17: #{tpu_custom_call.1} parent=11 // pred_check
          %p230 = pneg %p100
        $region18: #{tpu_custom_call.1} parent=11 // pred_check_branch
          %232 = sbr.rel (%p230) target = $region20
        $region19: #{tpu_custom_call.1} parent=11 // pred_region
          _
        $region20: #{tpu_custom_call.1} parent=11 // pred_fallthru
          _
        // Predicated region
        $region21: #{tpu_custom_call.1} parent=11 // pred_check
          %p233 = pneg %p121
        $region22: #{tpu_custom_call.1} parent=11 // pred_check_branch
          %235 = sbr.rel (%p233) target = $region24
        $region23: #{tpu_custom_call.1} parent=11 // pred_region
          _
        $region24: #{tpu_custom_call.1} parent=11 // pred_fallthru
          _
        // Predicated region
        $region25: #{tpu_custom_call.1} parent=11 // pred_check
          %p236 = pneg %p142
        $region26: #{tpu_custom_call.1} parent=11 // pred_check_branch
          %238 = sbr.rel (%p236) target = $region28
        $region27: #{tpu_custom_call.1} parent=11 // pred_region
          _
        $region28: #{tpu_custom_call.1} parent=11 // pred_fallthru
          _
        // Predicated region
        $region29: #{tpu_custom_call.1} parent=11 // pred_check
          %p239 = pneg %p163
        $region30: #{tpu_custom_call.1} parent=11 // pred_check_branch
          %241 = sbr.rel (%p239) target = $region32
        $region31: #{tpu_custom_call.1} parent=11 // pred_region
          _
        $region32: #{tpu_custom_call.1} parent=11 // pred_fallthru
          _
        // Predicated region
        $region33: #{tpu_custom_call.1} parent=11 // pred_check
          %p242 = pneg %p184
        $region34: #{tpu_custom_call.1} parent=11 // pred_check_branch
          %244 = sbr.rel (%p242) target = $region36
        $region35: #{tpu_custom_call.1} parent=11 // pred_region
          _
        $region36: #{tpu_custom_call.1} parent=11 // pred_fallthru
          _
      $region12: #{tpu_custom_call.1} parent=5 // pred_fallthru
        _
      %p245 = scmp.lt.s32.totalorder %s18, 2
      // Predicated region
      $region37: #{tpu_custom_call.1} parent=5 // pred_check
        %p246 = pneg %p245
      $region38: #{tpu_custom_call.1} parent=5 // pred_check_branch
        %248 = sbr.rel (%p246) target = $region40
      $region39: #{tpu_custom_call.1} parent=5 // pred_region
        // Predicated region
        $region41: #{tpu_custom_call.1} parent=39 // pred_check
          %p249 = pneg %p52
        $region42: #{tpu_custom_call.1} parent=39 // pred_check_branch
          %251 = sbr.rel (%p249) target = $region44
        $region43: #{tpu_custom_call.1} parent=39 // pred_region
          %p252 = scmp.lt.s32.totalorder %s25, 1
          %s253 = scalar_select %p252, %s25, 1
          %p254 = scmp.lt.s32.totalorder %s26, 0
          %s255 = scalar_select %p254, %s26, 0
          %s256 = sadd.s32 %s255, %s253
          %s257 = scalar_lea.vmem %s0, %s256
        $region44: #{tpu_custom_call.1} parent=39 // pred_fallthru
          _
      $region40: #{tpu_custom_call.1} parent=5 // pred_fallthru
        _
      %p258 = scmp.le.s32.totalorder 1, %s18
      %p259 = scmp.lt.s32.totalorder %s18, 3
      %p260 = pnand %p258, %p259
      %p261 = pneg %p260
      // Predicated region
      $region45: #{tpu_custom_call.1} parent=5 // pred_check
        _
      $region46: #{tpu_custom_call.1} parent=5 // pred_check_branch
        %263 = sbr.rel (%p260) target = $region48
      $region47: #{tpu_custom_call.1} parent=5 // pred_region
        %s264 = ssub.s32 %s18, 1
        %p265 = scmp.lt.s32.totalorder %s27, 1
        %s266 = scalar_select %p265, %s27, 1
        %p267 = scmp.lt.s32.totalorder %s28, 0
        %s268 = scalar_select %p267, %s28, 0
        %s269 = sadd.s32 %s268, %s266
        %s270 = scalar_lea.vmem %s0, %s269
        %p271 = pneg %p58
        %p272 = pneg %p55
        %p273 = pneg %p79
        %p274 = pneg %p76
        %p275 = pneg %p100
        %p276 = pneg %p97
        %p277 = pneg %p121
        %p278 = pneg %p118
        %p279 = pneg %p142
        %p280 = pneg %p139
        %p281 = pneg %p163
        %p282 = pneg %p160
        %p283 = pneg %p184
        %p284 = pneg %p181
        %p285 = pneg %p212
        %p286 = pneg %p209
        %s287 = sand.u32 %s199, 1
        %s288 = scalar_lea.sflag [#allocation4], %s287
        %s289 = sand.u32 %s199, 1
        %s290 = scalar_lea.vmem [#allocation3], %s289
        %p291 = scmp.lt.s32.totalorder %s27, 1
        %s292 = scalar_select %p291, %s27, 1
        %p293 = scmp.lt.s32.totalorder %s28, 0
        %s294 = scalar_select %p293, %s28, 0
        %s295 = sadd.s32 %s294, %s292
        %s296 = scalar_lea.vmem %s0, %s295
        %v297 = vld [vmem:[%s296] sm:$0x1]
        %s298 = smul.u32 %s27, 32
        %s299 = scalar_lea.vmem %s1, %s298
        %v300 = vld [vmem:[%s299] sm:$0xff]
        %v301 = vld [vmem:[%s299 + $0x8] sm:$0xff]
        %v302 = vld [vmem:[%s299 + $0x10] sm:$0xff]
        %v303 = vld [vmem:[%s299 + $0x18] sm:$0xff]
        %v304 = vld [vmem:[%s2] sm:$0xff]
        %v305 = vld [vmem:[%s2 + $0x8] sm:$0xff]
        %v306 = vld [vmem:[%s2 + $0x10] sm:$0xff]
        %v307 = vld [vmem:[%s2 + $0x18] sm:$0xff]
        %309 = vset.pattern.permute.xlu0 0
        %310 = vperm.xlu0 %309, %v304
        %v311 = vpop.permute.xlu0 %310
        %314 = vset.pattern.permute.xlu0 0
        %315 = vperm.xlu0 %314, %v305
        %v316 = vpop.permute.xlu0 %315
        %319 = vset.pattern.permute.xlu0 0
        %320 = vperm.xlu0 %319, %v306
        %v321 = vpop.permute.xlu0 %320
        %324 = vset.pattern.permute.xlu0 0
        %325 = vperm.xlu0 %324, %v307
        %v326 = vpop.permute.xlu0 %325
        %v329 = vlaneseq
        %v330 = vshrl.u32 %v329, 7
        %v331 = vsub.s32 0, %v330
        %v332 = vrot.slane %v297, %v331
        %v334 = vmul.f32 %v311, %v332
        %v335 = vmul.f32 %v316, %v332
        %v336 = vmul.f32 %v321, %v332
        %v337 = vmul.f32 %v326, %v332
        %v338 = vld [vmem:[%s3] sm:$0xff]
        %v339 = vld [vmem:[%s3 + $0x8] sm:$0xff]
        %v340 = vld [vmem:[%s3 + $0x10] sm:$0xff]
        %v341 = vld [vmem:[%s3 + $0x18] sm:$0xff]
        %343 = vset.pattern.permute.xlu0 0
        %344 = vperm.xlu0 %343, %v338
        %v345 = vpop.permute.xlu0 %344
        %348 = vset.pattern.permute.xlu0 0
        %349 = vperm.xlu0 %348, %v339
        %v350 = vpop.permute.xlu0 %349
        %353 = vset.pattern.permute.xlu0 0
        %354 = vperm.xlu0 %353, %v340
        %v355 = vpop.permute.xlu0 %354
        %358 = vset.pattern.permute.xlu0 0
        %359 = vperm.xlu0 %358, %v341
        %v360 = vpop.permute.xlu0 %359
        %v362 = vadd.f32 %v334, %v345
        %v363 = vadd.f32 %v335, %v350
        %v364 = vadd.f32 %v336, %v355
        %v365 = vadd.f32 %v337, %v360
        %v366 = vtanh.pop %v362
        %v367 = vtanh.pop %v363
        %v368 = vtanh.pop %v364
        %v369 = vtanh.pop %v365
        %v370 = vld [vmem:[%s4] sm:$0xff]
        %v371 = vld [vmem:[%s4 + $0x8] sm:$0xff]
        %v372 = vld [vmem:[%s4 + $0x10] sm:$0xff]
        %v373 = vld [vmem:[%s4 + $0x18] sm:$0xff]
        %375 = vset.pattern.permute.xlu0 0
        %376 = vperm.xlu0 %375, %v300
        %v377 = vpop.permute.xlu0 %376
        %380 = vset.pattern.permute.xlu0 0
        %381 = vperm.xlu0 %380, %v301
        %v382 = vpop.permute.xlu0 %381
        %385 = vset.pattern.permute.xlu0 0
        %386 = vperm.xlu0 %385, %v302
        %v387 = vpop.permute.xlu0 %386
        %390 = vset.pattern.permute.xlu0 0
        %391 = vperm.xlu0 %390, %v303
        %v392 = vpop.permute.xlu0 %391
        %vm394 = vcmask 261120
        %v396 = vsel %vm394, %v370, 0
        %v399 = vsel %vm394, %v371, 0
        %v402 = vsel %vm394, %v372, 0
        %v405 = vsel %vm394, %v373, 0
        %407 = vmatprep.subr.mxu0 0.0
        %408 = vmatpush1.msra.mxu0 0.0
        %409 = vmatprep.subr.mxu0 0.0
        %410 = vmatpush1.msra.mxu0 0.0
        %411 = vmatprep.subr.mxu0 0.0
        %412 = vmatpush1.msra.mxu0 0.0
        %413 = vmatprep.subr.mxu0 0.0
        %414 = vmatpush1.msra.mxu0 0.0
        %415 = vmatprep.subr.mxu0 0.0
        %416 = vmatpush1.msra.mxu0 0.0
        %417 = vmatprep.subr.mxu0 0.0
        %418 = vmatpush1.msra.mxu0 0.0
        %419 = vmatprep.subr.mxu0 0.0
        %420 = vmatpush1.msra.mxu0 0.0
        %421 = vmatprep.subr.mxu0 0.0
        %422 = vmatpush1.msra.mxu0 0.0
        %423 = vmatprep.subr.mxu0 0.0
        %424 = vmatpush1.msra.mxu0 0.0
        %425 = vmatprep.subr.mxu0 0.0
        %426 = vmatpush1.msra.mxu0 0.0
        %427 = vmatprep.subr.mxu0 0.0
        %428 = vmatpush1.msra.mxu0 0.0
        %429 = vmatprep.subr.mxu0 0.0
        %430 = vmatpush1.msra.mxu0 0.0
        %431 = vmatprep.subr.mxu0 0.0
        %432 = vmatpush1.msra.mxu0 %v369
        %433 = vmatprep.subr.mxu0 0.0
        %434 = vmatpush1.msra.mxu0 %v368
        %435 = vmatprep.subr.mxu0 0.0
        %436 = vmatpush1.msra.mxu0 %v367
        %437 = vmatprep.subr.mxu0 0.0
        %438 = vmatpush1.msra.mxu0 %v366
        %439 = vmatprep.subr.mxu0 0.0
        %440 = vmatpush2.msra.mxu0 0.0
        %441 = vmatprep.subr.mxu0 0.0
        %442 = vmatpush2.msra.mxu0 0.0
        %443 = vmatprep.subr.mxu0 0.0
        %444 = vmatpush2.msra.mxu0 0.0
        %445 = vmatprep.subr.mxu0 0.0
        %446 = vmatpush2.msra.mxu0 0.0
        %447 = vmatprep.subr.mxu0 0.0
        %448 = vmatpush2.msra.mxu0 0.0
        %449 = vmatprep.subr.mxu0 0.0
        %450 = vmatpush2.msra.mxu0 0.0
        %451 = vmatprep.subr.mxu0 0.0
        %452 = vmatpush2.msra.mxu0 0.0
        %453 = vmatprep.subr.mxu0 0.0
        %454 = vmatpush2.msra.mxu0 0.0
        %455 = vmatprep.subr.mxu0 0.0
        %456 = vmatpush2.msra.mxu0 0.0
        %457 = vmatprep.subr.mxu0 0.0
        %458 = vmatpush2.msra.mxu0 0.0
        %459 = vmatprep.subr.mxu0 0.0
        %460 = vmatpush2.msra.mxu0 0.0
        %461 = vmatprep.subr.mxu0 0.0
        %462 = vmatpush2.msra.mxu0 0.0
        %463 = vmatprep.subr.mxu0 0.0
        %464 = vmatpush2.msra.mxu0 0.0
        %465 = vmatprep.subr.mxu0 0.0
        %466 = vmatpush2.msra.mxu0 0.0
        %467 = vmatprep.subr.mxu0 0.0
        %468 = vmatpush2.msra.mxu0 0.0
        %469 = vmatprep.subr.mxu0 0.0
        %470 = vmatpush2.msra.mxu0 0.0
        %471 = vmatprep.mubr.f32.mxu0 0.0
        %472 = vmatmul.mubr.f32.gmra.mxu0 %v396
        %v473 = vpop.f32.mrf.mxu0
        %v474 = vadd.f32 %v377, %v473
        %v475 = vpop.f32.mrf.mxu0
        %476 = vmatprep.mubr.f32.mxu0 0.0
        %477 = vmatmul.mubr.f32.gmra.mxu0 %v399
        %v478 = vpop.f32.mrf.mxu0
        %v479 = vadd.f32 %v382, %v478
        %v480 = vpop.f32.mrf.mxu0
        %481 = vmatprep.mubr.f32.mxu0 0.0
        %482 = vmatmul.mubr.f32.gmra.mxu0 %v402
        %v483 = vpop.f32.mrf.mxu0
        %v484 = vadd.f32 %v387, %v483
        %v485 = vpop.f32.mrf.mxu0
        %486 = vmatprep.mubr.f32.mxu0 0.0
        %487 = vmatmul.mubr.f32.gmra.mxu0 %v405
        %v488 = vpop.f32.mrf.mxu0
        %v489 = vadd.f32 %v392, %v488
        %v490 = vpop.f32.mrf.mxu0
        %491 = vdwg.mxu0
        %v492 = vtanh.pop %v474
        %v493 = vtanh.pop %v479
        %v494 = vtanh.pop %v484
        %v495 = vtanh.pop %v489
        %v496 = vld [vmem:[%s5] sm:$0x1]
        %v497 = vld [vmem:[#allocation2] sm:$0x1]
        %499 = vset.pattern.permute.xlu0 0
        %500 = vperm.xlu0 %499, %v497
        %v501 = vpop.permute.xlu0 %500
        %v503 = vlaneseq
        %v504 = vshrl.u32 %v503, 7
        %v505 = vsub.s32 0, %v504
        %v506 = vrot.slane %v501, %v505
        %v508 = vsel %vm394, %v496, 0
        %510 = vmatprep.subr.mxu0 0.0
        %511 = vmatpush1.msra.mxu0 0.0
        %512 = vmatprep.subr.mxu0 0.0
        %513 = vmatpush1.msra.mxu0 0.0
        %514 = vmatprep.subr.mxu0 0.0
        %515 = vmatpush1.msra.mxu0 0.0
        %516 = vmatprep.subr.mxu0 0.0
        %517 = vmatpush1.msra.mxu0 0.0
        %518 = vmatprep.subr.mxu0 0.0
        %519 = vmatpush1.msra.mxu0 0.0
        %520 = vmatprep.subr.mxu0 0.0
        %521 = vmatpush1.msra.mxu0 0.0
        %522 = vmatprep.subr.mxu0 0.0
        %523 = vmatpush1.msra.mxu0 0.0
        %524 = vmatprep.subr.mxu0 0.0
        %525 = vmatpush1.msra.mxu0 0.0
        %526 = vmatprep.subr.mxu0 0.0
        %527 = vmatpush1.msra.mxu0 0.0
        %528 = vmatprep.subr.mxu0 0.0
        %529 = vmatpush1.msra.mxu0 0.0
        %530 = vmatprep.subr.mxu0 0.0
        %531 = vmatpush1.msra.mxu0 0.0
        %532 = vmatprep.subr.mxu0 0.0
        %533 = vmatpush1.msra.mxu0 0.0
        %534 = vmatprep.subr.mxu0 0.0
        %535 = vmatpush1.msra.mxu0 %v495
        %536 = vmatprep.subr.mxu0 0.0
        %537 = vmatpush1.msra.mxu0 %v494
        %538 = vmatprep.subr.mxu0 0.0
        %539 = vmatpush1.msra.mxu0 %v493
        %540 = vmatprep.subr.mxu0 0.0
        %541 = vmatpush1.msra.mxu0 %v492
        %542 = vmatprep.subr.mxu0 0.0
        %543 = vmatpush2.msra.mxu0 0.0
        %544 = vmatprep.subr.mxu0 0.0
        %545 = vmatpush2.msra.mxu0 0.0
        %546 = vmatprep.subr.mxu0 0.0
        %547 = vmatpush2.msra.mxu0 0.0
        %548 = vmatprep.subr.mxu0 0.0
        %549 = vmatpush2.msra.mxu0 0.0
        %550 = vmatprep.subr.mxu0 0.0
        %551 = vmatpush2.msra.mxu0 0.0
        %552 = vmatprep.subr.mxu0 0.0
        %553 = vmatpush2.msra.mxu0 0.0
        %554 = vmatprep.subr.mxu0 0.0
        %555 = vmatpush2.msra.mxu0 0.0
        %556 = vmatprep.subr.mxu0 0.0
        %557 = vmatpush2.msra.mxu0 0.0
        %558 = vmatprep.subr.mxu0 0.0
        %559 = vmatpush2.msra.mxu0 0.0
        %560 = vmatprep.subr.mxu0 0.0
        %561 = vmatpush2.msra.mxu0 0.0
        %562 = vmatprep.subr.mxu0 0.0
        %563 = vmatpush2.msra.mxu0 0.0
        %564 = vmatprep.subr.mxu0 0.0
        %565 = vmatpush2.msra.mxu0 0.0
        %566 = vmatprep.subr.mxu0 0.0
        %567 = vmatpush2.msra.mxu0 0.0
        %568 = vmatprep.subr.mxu0 0.0
        %569 = vmatpush2.msra.mxu0 0.0
        %570 = vmatprep.subr.mxu0 0.0
        %571 = vmatpush2.msra.mxu0 0.0
        %572 = vmatprep.subr.mxu0 0.0
        %573 = vmatpush2.msra.mxu0 0.0
        %574 = vmatprep.mubr.f32.mxu0 0.0
        %575 = vmatmul.mubr.f32.gmra.mxu0 %v508
        %v576 = vpop.f32.mrf.mxu0
        %v577 = vadd.f32 %v506, %v576
        %v578 = vpop.f32.mrf.mxu0
        %579 = vdwg.mxu0
        %v580 = vtanh.pop %v577
        %581 = vst [vmem:[%s290] sm:$0x1] %v580
        %s582 = sand.u32 %s199, 1
        %s583 = scalar_lea.sflag [#allocation4], %s582
        %s584 = sand.u32 %s199, 1
        %s585 = scalar_lea.vmem [#allocation3], %s584
        // Predicated region
        $region49: #{tpu_custom_call.1} parent=47 // pred_check
          %p586 = pneg %p209
        $region50: #{tpu_custom_call.1} parent=47 // pred_check_branch
          %588 = sbr.rel (%p586) target = $region52
        $region51: #{tpu_custom_call.1} parent=47 // pred_region
          %s590 = ssub.s32 16, 16
          %591 = vsyncadd %s583, %s590
          %s592 = sadd.s32 %s28, %s27
          %s593 = smul.addr %s592, 16
          %s594 = scalar_lea.hbm %s7, %s593
          %s596 = sshll.u32 %s585, 4
          %s597 = int_to_ptr.vmem [resolvable:$true] %s596
          %599 = dma.vmem_to_hbm [thread:$0]  %s597, 16, %s594, %s583
        $region52: #{tpu_custom_call.1} parent=47 // pred_fallthru
          _
      $region48: #{tpu_custom_call.1} parent=5 // pred_fallthru
        _
      %p600 = scmp.le.s32.totalorder 2, %s18
      // Predicated region
      $region53: #{tpu_custom_call.1} parent=5 // pred_check
        %p601 = pneg %p600
      $region54: #{tpu_custom_call.1} parent=5 // pred_check_branch
        %603 = sbr.rel (%p601) target = $region56
      $region55: #{tpu_custom_call.1} parent=5 // pred_region
        %s604 = ssub.s32 %s18, 2
        // Predicated region
        $region57: #{tpu_custom_call.1} parent=55 // pred_check
          %p605 = pneg %p215
        $region58: #{tpu_custom_call.1} parent=55 // pred_check_branch
          %607 = sbr.rel (%p605) target = $region60
        $region59: #{tpu_custom_call.1} parent=55 // pred_region
          %s608 = sand.u32 %s200, 1
          %s609 = scalar_lea.sflag [#allocation4], %s608
          %s610 = sand.u32 %s200, 1
          %s611 = scalar_lea.vmem [#allocation3], %s610
          %612 = dma.done %s609, 16
        $region60: #{tpu_custom_call.1} parent=55 // pred_fallthru
          _
      $region56: #{tpu_custom_call.1} parent=5 // pred_fallthru
        _
    $region6: #{tpu_custom_call.1} parent=1 // loop_footer
      %s22 = sadd.s32 1, %s18
    $region7: #{tpu_custom_call.1} parent=1 // loop_footer_branch
      %17 = sbr.rel target = $region3
    $region8: #{tpu_custom_call.1} parent=1 // loop_exit
      _
    %613 = vsyncpa [#allocation4], 1
    %s614 = scalar_lea.sflag [#allocation4], 1
    %615 = vsyncpa %s614, 1

</llo_original>
